<compile_context>
chip_gen: v7x
topology: tpu7x:2x2x1
jax: 0.10.0
libtpu: 0.0.40
codegen_flags: <defaults>
</compile_context>

<pallas_src>
import functools

import jax
import jax.numpy as jnp
from jax.experimental import pallas as pl
from jax.experimental.pallas import tpu as pltpu

LANE = 128  # TPU vreg lane width


def _round_up(v, m):
    return ((v + m - 1) // m) * m


# ----------------------------- Pallas kernel ------------------------------- #

def fused_gcn_kernel(a_ref, x_ref, p_ref,
                     w1_ref, b1_ref, w2_ref, b2_ref, w3_ref, b3_ref,
                     wl_ref, bl_ref, o_ref):
    """Fused forward: relu(A(XW)+b) x3  ->  P @ h  ->  pooled @ WL + bL."""
    a = a_ref[...]
    h = x_ref[...]

    def gcn(h, w_ref, b_ref):
        xw = jnp.dot(h, w_ref[...], preferred_element_type=jnp.float32)
        z = jnp.dot(a, xw, preferred_element_type=jnp.float32)
        return jnp.maximum(z + b_ref[...], 0.0)

    h = gcn(h, w1_ref, b1_ref)   # dropout: identity in eval mode
    h = gcn(h, w2_ref, b2_ref)
    h = gcn(h, w3_ref, b3_ref)

    pooled = jnp.dot(p_ref[...], h, preferred_element_type=jnp.float32)
    o_ref[...] = jnp.dot(pooled, wl_ref[...],
                         preferred_element_type=jnp.float32) + bl_ref[...]


# ------------------------------ host helpers -------------------------------- #

def build_normalized_adjacency(edge_index, num_nodes):
    # A[dst, src] += 1 (messages src -> dst), add self loops,
    # symmetric normalization D^{-1/2} A D^{-1/2}  (GCNConv convention).
    src, dst = edge_index[0], edge_index[1]
    a = jnp.zeros((num_nodes, num_nodes), jnp.float32).at[dst, src].add(1.0)
    a = a + jnp.eye(num_nodes, dtype=jnp.float32)
    deg = a.sum(axis=1)
    d_inv_sqrt = jnp.where(deg > 0, 1.0 / jnp.sqrt(deg), 0.0)
    return d_inv_sqrt[:, None] * a * d_inv_sqrt[None, :]


def build_mean_pool_matrix(batch, num_graphs):
    onehot = (batch[None, :] == jnp.arange(num_graphs)[:, None]).astype(jnp.float32)
    counts = jnp.maximum(onehot.sum(axis=1, keepdims=True), 1.0)
    return onehot / counts  # [num_graphs, num_nodes]


def _pad2(x, rows, cols):
    out = jnp.zeros((rows, cols), jnp.float32)
    return out.at[: x.shape[0], : x.shape[1]].set(x)


# ------------------------------ JAX wrapper --------------------------------- #

@functools.partial(jax.jit, static_argnames=("num_graphs",))
def graph_t_factor_forward(params, x, edge_index, batch, num_graphs):
    n, f = x.shape
    h_dim = params["w1"].shape[1]
    c = params["wl"].shape[1]

    # pad every contraction / lane dimension up to a multiple of 128
    n_p = _round_up(n, LANE)
    f_p = _round_up(f, LANE)
    h_p = _round_up(h_dim, LANE)
    c_p = _round_up(c, LANE)

    a_hat = build_normalized_adjacency(edge_index, n)
    p = build_mean_pool_matrix(batch, num_graphs)

    a_pad = _pad2(a_hat, n_p, n_p)
    x_pad = _pad2(x, n_p, f_p)
    p_pad = _pad2(p, num_graphs, n_p)

    w1 = _pad2(params["w1"], f_p, h_p)
    w2 = _pad2(params["w2"], h_p, h_p)
    w3 = _pad2(params["w3"], h_p, h_p)
    wl = _pad2(params["wl"], h_p, c_p)
    b1 = _pad2(params["b1"][None, :], 1, h_p)
    b2 = _pad2(params["b2"][None, :], 1, h_p)
    b3 = _pad2(params["b3"][None, :], 1, h_p)
    bl = _pad2(params["bl"][None, :], 1, c_p)

    flops = int(
        2 * (n_p * f_p * h_p + n_p * n_p * h_p)          # layer 1
        + 2 * 2 * (n_p * h_p * h_p + n_p * n_p * h_p)    # layers 2, 3
        + 2 * num_graphs * n_p * h_p                     # pooling matmul
        + 2 * num_graphs * h_p * c_p                     # final linear
    )
    bytes_accessed = int(4 * (
        a_pad.size + x_pad.size + p_pad.size
        + w1.size + w2.size + w3.size + wl.size
        + b1.size + b2.size + b3.size + bl.size
        + num_graphs * c_p
    ))

    vmem_spec = pl.BlockSpec(memory_space=pltpu.MemorySpace.VMEM)

    out_pad = pl.pallas_call(
        fused_gcn_kernel,
        out_shape=jax.ShapeDtypeStruct((num_graphs, c_p), jnp.float32),
        in_specs=[vmem_spec] * 11,
        out_specs=vmem_spec,
        cost_estimate=pl.CostEstimate(
            flops=flops, transcendentals=0, bytes_accessed=bytes_accessed),
    )(a_pad, x_pad, p_pad, w1, b1, w2, b2, w3, b3, wl, bl)

    # strip class padding
    return out_pad[:, :c]


# --------------------------- reference (pure JAX) --------------------------- #

def reference_forward(params, x, edge_index, batch, num_graphs):
    a_hat = build_normalized_adjacency(edge_index, x.shape[0])
    p = build_mean_pool_matrix(batch, num_graphs)
    h = jnp.maximum(a_hat @ (x @ params["w1"]) + params["b1"], 0.0)
    h = jnp.maximum(a_hat @ (h @ params["w2"]) + params["b2"], 0.0)
    h = jnp.maximum(a_hat @ (h @ params["w3"]) + params["b3"], 0.0)
    return (p @ h) @ params["wl"] + params["bl"]


# ----------------------------------- main ----------------------------------- #

if __name__ == "__main__":
    NUM_GRAPHS = 4
    NODES_PER_GRAPH = 16
    N = NUM_GRAPHS * NODES_PER_GRAPH          # 64 nodes total
    IN_FEATURES = 32
    HIDDEN = 32
    NUM_CLASSES = 8

    key = jax.random.PRNGKey(0)
    k_x, k1, k2, k3, k4 = jax.random.split(key, 5)

    # node features
    x = jax.random.normal(k_x, (N, IN_FEATURES), dtype=jnp.float32)

    # bidirectional ring edges inside each graph
    srcs, dsts = [], []
    for g in range(NUM_GRAPHS):
        base = g * NODES_PER_GRAPH
        for i in range(NODES_PER_GRAPH):
            a_node = base + i
            b_node = base + (i + 1) % NODES_PER_GRAPH
            srcs += [a_node, b_node]
            dsts += [b_node, a_node]
    edge_index = jnp.array([srcs, dsts], dtype=jnp.int32)

    # graph assignment per node
    batch = jnp.repeat(jnp.arange(NUM_GRAPHS, dtype=jnp.int32), NODES_PER_GRAPH)

    # deterministic parameter init (glorot-like)
    def init_linear(k, fan_in, fan_out):
        scale = (2.0 / (fan_in + fan_out)) ** 0.5
        return scale * jax.random.normal(k, (fan_in, fan_out), dtype=jnp.float32)

    params = {
        "w1": init_linear(k1, IN_FEATURES, HIDDEN),
        "b1": jnp.zeros((HIDDEN,), jnp.float32),
        "w2": init_linear(k2, HIDDEN, HIDDEN),
        "b2": jnp.zeros((HIDDEN,), jnp.float32),
        "w3": init_linear(k3, HIDDEN, HIDDEN),
        "b3": jnp.zeros((HIDDEN,), jnp.float32),
        "wl": init_linear(k4, HIDDEN, NUM_CLASSES),
        "bl": jnp.zeros((NUM_CLASSES,), jnp.float32),
    }

    out = graph_t_factor_forward(params, x, edge_index, batch, NUM_GRAPHS)
    out = jax.block_until_ready(out)

    ref = reference_forward(params, x, edge_index, batch, NUM_GRAPHS)
    assert out.shape == (NUM_GRAPHS, NUM_CLASSES)
    assert jnp.allclose(out, ref, atol=1e-4, rtol=1e-4), "Pallas output mismatch vs reference"

    # TODO(synk): nn.Dropout is modeled in eval mode (identity); train-mode random
    # masking would use pltpu.prng_seed / pltpu.stateful_bernoulli inside the kernel.
    # TODO(synk): for large N, tile A_hat rows (BlockSpec over a "parallel" row-tile
    # grid axis + k-axis accumulator) instead of keeping the full [N, N] array in
    # VMEM; at N=64 everything (<400 KiB) comfortably fits on v5e/v6e/v7x.
    print("KERNEL_OK")
</pallas_src>

<mosaic_0001>
module attributes {stable_mosaic.version = 11 : i64} {
  func.func private @main(%arg0: i32) attributes {dimension_semantics = [#tpu.dimension_semantics<core_parallel>], iteration_bounds = array<i64: 2>, tpu.core_type = #tpu.core_type<sc_scalar_subcore>, window_params = []} {
    return
  }
}

module attributes {stable_mosaic.version = 11 : i64} {
  func.func private @main(%arg0: i32) attributes {dimension_semantics = [#tpu.dimension_semantics<core_parallel>], iteration_bounds = array<i64: 2>, tpu.core_type = #tpu.core_type<sc_scalar_subcore>, window_params = []} {
    return
  }
}

module attributes {stable_mosaic.version = 11 : i64} {
  func.func @fused_gcn_kernel(%arg0: memref<128x128xf32, #tpu.memory_space<vmem>>, %arg1: memref<128x128xf32, #tpu.memory_space<vmem>>, %arg2: memref<4x128xf32, #tpu.memory_space<vmem>>, %arg3: memref<128x128xf32, #tpu.memory_space<vmem>>, %arg4: memref<1x128xf32, #tpu.memory_space<vmem>>, %arg5: memref<128x128xf32, #tpu.memory_space<vmem>>, %arg6: memref<1x128xf32, #tpu.memory_space<vmem>>, %arg7: memref<128x128xf32, #tpu.memory_space<vmem>>, %arg8: memref<1x128xf32, #tpu.memory_space<vmem>>, %arg9: memref<128x128xf32, #tpu.memory_space<vmem>>, %arg10: memref<1x128xf32, #tpu.memory_space<vmem>>, %arg11: memref<4x128xf32, #tpu.memory_space<vmem>>) attributes {dimension_semantics = [], scalar_prefetch = 0 : i64, scratch_operands = 0 : i64, tpu.core_type = #tpu.core_type<tc>} {
    %c0 = arith.constant 0 : index
    %c0_0 = arith.constant 0 : index
    %0 = vector.load %arg0[%c0, %c0_0] : memref<128x128xf32, #tpu.memory_space<vmem>>, vector<128x128xf32>
    %c0_1 = arith.constant 0 : index
    %c0_2 = arith.constant 0 : index
    %1 = vector.load %arg1[%c0_1, %c0_2] : memref<128x128xf32, #tpu.memory_space<vmem>>, vector<128x128xf32>
    %c0_3 = arith.constant 0 : index
    %c0_4 = arith.constant 0 : index
    %2 = vector.load %arg3[%c0_3, %c0_4] : memref<128x128xf32, #tpu.memory_space<vmem>>, vector<128x128xf32>
    %cst = arith.constant dense<0.000000e+00> : vector<128x128xf32>
    %3 = tpu.matmul %1, %2, %cst {dimension_numbers = #tpu.dot_dimension_numbers<[1], [0], [0], [1], [0, 0, 1, 1], [], []>} : vector<128x128xf32>, vector<128x128xf32>, vector<128x128xf32> -> vector<128x128xf32>
    %cst_5 = arith.constant dense<0.000000e+00> : vector<128x128xf32>
    %4 = tpu.matmul %0, %3, %cst_5 {dimension_numbers = #tpu.dot_dimension_numbers<[1], [0], [0], [1], [0, 0, 1, 1], [], []>} : vector<128x128xf32>, vector<128x128xf32>, vector<128x128xf32> -> vector<128x128xf32>
    %c0_6 = arith.constant 0 : index
    %c0_7 = arith.constant 0 : index
    %5 = vector.load %arg4[%c0_6, %c0_7] : memref<1x128xf32, #tpu.memory_space<vmem>>, vector<1x128xf32>
    %6 = vector.broadcast %5 : vector<1x128xf32> to vector<128x128xf32>
    %7 = arith.addf %4, %6 : vector<128x128xf32>
    %cst_8 = arith.constant 0.000000e+00 : f32
    %8 = vector.broadcast %cst_8 : f32 to vector<128x128xf32>
    %9 = arith.maximumf %7, %8 : vector<128x128xf32>
    %c0_9 = arith.constant 0 : index
    %c0_10 = arith.constant 0 : index
    %10 = vector.load %arg5[%c0_9, %c0_10] : memref<128x128xf32, #tpu.memory_space<vmem>>, vector<128x128xf32>
    %cst_11 = arith.constant dense<0.000000e+00> : vector<128x128xf32>
    %11 = tpu.matmul %9, %10, %cst_11 {dimension_numbers = #tpu.dot_dimension_numbers<[1], [0], [0], [1], [0, 0, 1, 1], [], []>} : vector<128x128xf32>, vector<128x128xf32>, vector<128x128xf32> -> vector<128x128xf32>
    %cst_12 = arith.constant dense<0.000000e+00> : vector<128x128xf32>
    %12 = tpu.matmul %0, %11, %cst_12 {dimension_numbers = #tpu.dot_dimension_numbers<[1], [0], [0], [1], [0, 0, 1, 1], [], []>} : vector<128x128xf32>, vector<128x128xf32>, vector<128x128xf32> -> vector<128x128xf32>
    %c0_13 = arith.constant 0 : index
    %c0_14 = arith.constant 0 : index
    %13 = vector.load %arg6[%c0_13, %c0_14] : memref<1x128xf32, #tpu.memory_space<vmem>>, vector<1x128xf32>
    %14 = vector.broadcast %13 : vector<1x128xf32> to vector<128x128xf32>
    %15 = arith.addf %12, %14 : vector<128x128xf32>
    %cst_15 = arith.constant 0.000000e+00 : f32
    %16 = vector.broadcast %cst_15 : f32 to vector<128x128xf32>
    %17 = arith.maximumf %15, %16 : vector<128x128xf32>
    %c0_16 = arith.constant 0 : index
    %c0_17 = arith.constant 0 : index
    %18 = vector.load %arg7[%c0_16, %c0_17] : memref<128x128xf32, #tpu.memory_space<vmem>>, vector<128x128xf32>
    %cst_18 = arith.constant dense<0.000000e+00> : vector<128x128xf32>
    %19 = tpu.matmul %17, %18, %cst_18 {dimension_numbers = #tpu.dot_dimension_numbers<[1], [0], [0], [1], [0, 0, 1, 1], [], []>} : vector<128x128xf32>, vector<128x128xf32>, vector<128x128xf32> -> vector<128x128xf32>
    %cst_19 = arith.constant dense<0.000000e+00> : vector<128x128xf32>
    %20 = tpu.matmul %0, %19, %cst_19 {dimension_numbers = #tpu.dot_dimension_numbers<[1], [0], [0], [1], [0, 0, 1, 1], [], []>} : vector<128x128xf32>, vector<128x128xf32>, vector<128x128xf32> -> vector<128x128xf32>
    %c0_20 = arith.constant 0 : index
    %c0_21 = arith.constant 0 : index
    %21 = vector.load %arg8[%c0_20, %c0_21] : memref<1x128xf32, #tpu.memory_space<vmem>>, vector<1x128xf32>
    %22 = vector.broadcast %21 : vector<1x128xf32> to vector<128x128xf32>
    %23 = arith.addf %20, %22 : vector<128x128xf32>
    %cst_22 = arith.constant 0.000000e+00 : f32
    %24 = vector.broadcast %cst_22 : f32 to vector<128x128xf32>
    %25 = arith.maximumf %23, %24 : vector<128x128xf32>
    %c0_23 = arith.constant 0 : index
    %c0_24 = arith.constant 0 : index
    %26 = vector.load %arg2[%c0_23, %c0_24] : memref<4x128xf32, #tpu.memory_space<vmem>>, vector<4x128xf32>
    %cst_25 = arith.constant dense<0.000000e+00> : vector<4x128xf32>
    %27 = tpu.matmul %26, %25, %cst_25 {dimension_numbers = #tpu.dot_dimension_numbers<[1], [0], [0], [1], [0, 0, 1, 1], [], []>} : vector<4x128xf32>, vector<128x128xf32>, vector<4x128xf32> -> vector<4x128xf32>
    %c0_26 = arith.constant 0 : index
    %c0_27 = arith.constant 0 : index
    %28 = vector.load %arg9[%c0_26, %c0_27] : memref<128x128xf32, #tpu.memory_space<vmem>>, vector<128x128xf32>
    %cst_28 = arith.constant dense<0.000000e+00> : vector<4x128xf32>
    %29 = tpu.matmul %27, %28, %cst_28 {dimension_numbers = #tpu.dot_dimension_numbers<[1], [0], [0], [1], [0, 0, 1, 1], [], []>} : vector<4x128xf32>, vector<128x128xf32>, vector<4x128xf32> -> vector<4x128xf32>
    %c0_29 = arith.constant 0 : index
    %c0_30 = arith.constant 0 : index
    %30 = vector.load %arg10[%c0_29, %c0_30] : memref<1x128xf32, #tpu.memory_space<vmem>>, vector<1x128xf32>
    %31 = vector.broadcast %30 : vector<1x128xf32> to vector<4x128xf32>
    %32 = arith.addf %29, %31 : vector<4x128xf32>
    %c0_31 = arith.constant 0 : index
    %c0_32 = arith.constant 0 : index
    %33 = vector.load %arg11[%c0_31, %c0_32] : memref<4x128xf32, #tpu.memory_space<vmem>>, vector<4x128xf32>
    tpu.vector_store %arg11[%c0_31, %c0_32], %32 {strides = array<i32>} : memref<4x128xf32, #tpu.memory_space<vmem>>, vector<4x128xf32>,
    return
  }
}

</mosaic_0001>

<llo_original>
// kernel: graph_t_factor_forward.1
$region0: #{graph_t_factor_forward.1}
  #allocation0 [shape = 'u32[]', space=smem, size = 0x4, offset = 0x4, fixed_abs, tag = 'smem constant byte address 0x4 - core index']
  #allocation1 [shape = 'u32[144,128]{1,0:T(1,128)}', space=vmem, size = 0x12000, scoped, tag = 'internal scratch']
  %s0 = inlined_call_operand.vmem [shape: f32[128,128], index: 0, kind: input, shape index: {}]
  %s1 = inlined_call_operand.vmem [shape: f32[128,128], index: 1, kind: input, shape index: {}]
  %s2 = inlined_call_operand.vmem [shape: f32[4,128], index: 2, kind: input, shape index: {}]
  %s3 = inlined_call_operand.vmem [shape: f32[128,128], index: 3, kind: input, shape index: {}]
  %s4 = inlined_call_operand.vmem [shape: f32[1,128], index: 4, kind: input, shape index: {}]
  %s5 = inlined_call_operand.vmem [shape: f32[128,128], index: 5, kind: input, shape index: {}]
  %s6 = inlined_call_operand.vmem [shape: f32[1,128], index: 6, kind: input, shape index: {}]
  %s7 = inlined_call_operand.vmem [shape: f32[128,128], index: 7, kind: input, shape index: {}]
  %s8 = inlined_call_operand.vmem [shape: f32[1,128], index: 8, kind: input, shape index: {}]
  %s9 = inlined_call_operand.vmem [shape: f32[128,128], index: 9, kind: input, shape index: {}]
  %s10 = inlined_call_operand.vmem [shape: f32[1,128], index: 10, kind: input, shape index: {}]
  %s11 = inlined_call_operand.hbm [shape: f32[4,128], index: 11, kind: output, shape index: {}]
  %s12 = sld [smem:[#allocation0]]
  $region54: #{graph_t_factor_forward.1} parent=0
    _
  %s14 = ssub.s32 1, %s12
  %s15 = scalar_select 0, %s14, %s12
  $region1: #{graph_t_factor_forward.1} parent=0
    #allocation2 [shape = 'u8[2048]{0}', space=vmem, size = 0x800, scoped, tag = 'output window, operand 0, single buffered']
    #allocation3 [shape = 's32[1]{0}', space=sflag, size = 0x4, scoped, tag = 'scoped memory for graph_t_factor_forward.1']
    %16 = vsyncpa [#allocation3], 0
    // Predicated region
    $region2: #{graph_t_factor_forward.1} parent=1 // pred_check
      _
    $region3: #{graph_t_factor_forward.1} parent=1 // pred_check_branch
      %18 = sbr.rel (0) target = $region5
    $region4: #{graph_t_factor_forward.1} parent=1 // pred_region
      _
    $region5: #{graph_t_factor_forward.1} parent=1 // pred_fallthru
      _
    // Predicated region
    $region6: #{graph_t_factor_forward.1} parent=1 // pred_check
      _
    $region7: #{graph_t_factor_forward.1} parent=1 // pred_check_branch
      %20 = sbr.rel (0) target = $region9
    $region8: #{graph_t_factor_forward.1} parent=1 // pred_region
      _
    $region9: #{graph_t_factor_forward.1} parent=1 // pred_fallthru
      _
    // Predicated region
    $region10: #{graph_t_factor_forward.1} parent=1 // pred_check
      _
    $region11: #{graph_t_factor_forward.1} parent=1 // pred_check_branch
      %22 = sbr.rel (0) target = $region13
    $region12: #{graph_t_factor_forward.1} parent=1 // pred_region
      _
    $region13: #{graph_t_factor_forward.1} parent=1 // pred_fallthru
      _
    // Predicated region
    $region14: #{graph_t_factor_forward.1} parent=1 // pred_check
      _
    $region15: #{graph_t_factor_forward.1} parent=1 // pred_check_branch
      %24 = sbr.rel (0) target = $region17
    $region16: #{graph_t_factor_forward.1} parent=1 // pred_region
      _
    $region17: #{graph_t_factor_forward.1} parent=1 // pred_fallthru
      _
    // Predicated region
    $region18: #{graph_t_factor_forward.1} parent=1 // pred_check
      _
    $region19: #{graph_t_factor_forward.1} parent=1 // pred_check_branch
      %26 = sbr.rel (0) target = $region21
    $region20: #{graph_t_factor_forward.1} parent=1 // pred_region
      _
    $region21: #{graph_t_factor_forward.1} parent=1 // pred_fallthru
      _
    // Predicated region
    $region22: #{graph_t_factor_forward.1} parent=1 // pred_check
      _
    $region23: #{graph_t_factor_forward.1} parent=1 // pred_check_branch
      %28 = sbr.rel (0) target = $region25
    $region24: #{graph_t_factor_forward.1} parent=1 // pred_region
      _
    $region25: #{graph_t_factor_forward.1} parent=1 // pred_fallthru
      _
    // Predicated region
    $region26: #{graph_t_factor_forward.1} parent=1 // pred_check
      _
    $region27: #{graph_t_factor_forward.1} parent=1 // pred_check_branch
      %30 = sbr.rel (0) target = $region29
    $region28: #{graph_t_factor_forward.1} parent=1 // pred_region
      _
    $region29: #{graph_t_factor_forward.1} parent=1 // pred_fallthru
      _
    // Predicated region
    $region30: #{graph_t_factor_forward.1} parent=1 // pred_check
      _
    $region31: #{graph_t_factor_forward.1} parent=1 // pred_check_branch
      %32 = sbr.rel (0) target = $region33
    $region32: #{graph_t_factor_forward.1} parent=1 // pred_region
      _
    $region33: #{graph_t_factor_forward.1} parent=1 // pred_fallthru
      _
    // Predicated region
    $region34: #{graph_t_factor_forward.1} parent=1 // pred_check
      _
    $region35: #{graph_t_factor_forward.1} parent=1 // pred_check_branch
      %34 = sbr.rel (0) target = $region37
    $region36: #{graph_t_factor_forward.1} parent=1 // pred_region
      _
    $region37: #{graph_t_factor_forward.1} parent=1 // pred_fallthru
      _
    // Predicated region
    $region38: #{graph_t_factor_forward.1} parent=1 // pred_check
      _
    $region39: #{graph_t_factor_forward.1} parent=1 // pred_check_branch
      %36 = sbr.rel (0) target = $region41
    $region40: #{graph_t_factor_forward.1} parent=1 // pred_region
      _
    $region41: #{graph_t_factor_forward.1} parent=1 // pred_fallthru
      _
    // Predicated region
    $region42: #{graph_t_factor_forward.1} parent=1 // pred_check
      _
    $region43: #{graph_t_factor_forward.1} parent=1 // pred_check_branch
      %38 = sbr.rel (0) target = $region45
    $region44: #{graph_t_factor_forward.1} parent=1 // pred_region
      _
    $region45: #{graph_t_factor_forward.1} parent=1 // pred_fallthru
      _
    %v39 = vld [vmem:[%s0] sm:$0xff]
    %v40 = vld [vmem:[%s0 + $0x8] sm:$0xff]
    %v41 = vld [vmem:[%s0 + $0x10] sm:$0xff]
    %v42 = vld [vmem:[%s0 + $0x18] sm:$0xff]
    %v43 = vld [vmem:[%s0 + $0x20] sm:$0xff]
    %v44 = vld [vmem:[%s0 + $0x28] sm:$0xff]
    %v45 = vld [vmem:[%s0 + $0x30] sm:$0xff]
    %v46 = vld [vmem:[%s0 + $0x38] sm:$0xff]
    %v47 = vld [vmem:[%s0 + $0x40] sm:$0xff]
    %v48 = vld [vmem:[%s0 + $0x48] sm:$0xff]
    %v49 = vld [vmem:[%s0 + $0x50] sm:$0xff]
    %v50 = vld [vmem:[%s0 + $0x58] sm:$0xff]
    %v51 = vld [vmem:[%s0 + $0x60] sm:$0xff]
    %v52 = vld [vmem:[%s0 + $0x68] sm:$0xff]
    %v53 = vld [vmem:[%s0 + $0x70] sm:$0xff]
    %v54 = vld [vmem:[%s0 + $0x78] sm:$0xff]
    %v55 = vld [vmem:[%s1] sm:$0xff]
    %v56 = vld [vmem:[%s1 + $0x8] sm:$0xff]
    %v57 = vld [vmem:[%s1 + $0x10] sm:$0xff]
    %v58 = vld [vmem:[%s1 + $0x18] sm:$0xff]
    %v59 = vld [vmem:[%s1 + $0x20] sm:$0xff]
    %v60 = vld [vmem:[%s1 + $0x28] sm:$0xff]
    %v61 = vld [vmem:[%s1 + $0x30] sm:$0xff]
    %v62 = vld [vmem:[%s1 + $0x38] sm:$0xff]
    %v63 = vld [vmem:[%s1 + $0x40] sm:$0xff]
    %v64 = vld [vmem:[%s1 + $0x48] sm:$0xff]
    %v65 = vld [vmem:[%s1 + $0x50] sm:$0xff]
    %v66 = vld [vmem:[%s1 + $0x58] sm:$0xff]
    %v67 = vld [vmem:[%s1 + $0x60] sm:$0xff]
    %v68 = vld [vmem:[%s1 + $0x68] sm:$0xff]
    %v69 = vld [vmem:[%s1 + $0x70] sm:$0xff]
    %v70 = vld [vmem:[%s1 + $0x78] sm:$0xff]
    %v71 = vld [vmem:[%s3] sm:$0xff]
    %v72 = vld [vmem:[%s3 + $0x8] sm:$0xff]
    %v73 = vld [vmem:[%s3 + $0x10] sm:$0xff]
    %v74 = vld [vmem:[%s3 + $0x18] sm:$0xff]
    %v75 = vld [vmem:[%s3 + $0x20] sm:$0xff]
    %v76 = vld [vmem:[%s3 + $0x28] sm:$0xff]
    %v77 = vld [vmem:[%s3 + $0x30] sm:$0xff]
    %v78 = vld [vmem:[%s3 + $0x38] sm:$0xff]
    %v79 = vld [vmem:[%s3 + $0x40] sm:$0xff]
    %v80 = vld [vmem:[%s3 + $0x48] sm:$0xff]
    %v81 = vld [vmem:[%s3 + $0x50] sm:$0xff]
    %v82 = vld [vmem:[%s3 + $0x58] sm:$0xff]
    %v83 = vld [vmem:[%s3 + $0x60] sm:$0xff]
    %v84 = vld [vmem:[%s3 + $0x68] sm:$0xff]
    %v85 = vld [vmem:[%s3 + $0x70] sm:$0xff]
    %v86 = vld [vmem:[%s3 + $0x78] sm:$0xff]
    %87 = vmatprep.subr.mxu0 0.0
    %88 = vmatpush1.msra.mxu0 %v71
    %89 = vmatprep.subr.mxu0 0.0
    %90 = vmatpush1.msra.mxu0 %v72
    %91 = vmatprep.subr.mxu0 0.0
    %92 = vmatpush1.msra.mxu0 %v73
    %93 = vmatprep.subr.mxu0 0.0
    %94 = vmatpush1.msra.mxu0 %v74
    %95 = vmatprep.subr.mxu0 0.0
    %96 = vmatpush1.msra.mxu0 %v75
    %97 = vmatprep.subr.mxu0 0.0
    %98 = vmatpush1.msra.mxu0 %v76
    %99 = vmatprep.subr.mxu0 0.0
    %100 = vmatpush1.msra.mxu0 %v77
    %101 = vmatprep.subr.mxu0 0.0
    %102 = vmatpush1.msra.mxu0 %v78
    %103 = vmatprep.subr.mxu0 0.0
    %104 = vmatpush1.msra.mxu0 %v79
    %105 = vmatprep.subr.mxu0 0.0
    %106 = vmatpush1.msra.mxu0 %v80
    %107 = vmatprep.subr.mxu0 0.0
    %108 = vmatpush1.msra.mxu0 %v81
    %109 = vmatprep.subr.mxu0 0.0
    %110 = vmatpush1.msra.mxu0 %v82
    %111 = vmatprep.subr.mxu0 0.0
    %112 = vmatpush1.msra.mxu0 %v83
    %113 = vmatprep.subr.mxu0 0.0
    %114 = vmatpush1.msra.mxu0 %v84
    %115 = vmatprep.subr.mxu0 0.0
    %116 = vmatpush1.msra.mxu0 %v85
    %117 = vmatprep.subr.mxu0 0.0
    %118 = vmatpush1.msra.mxu0 %v86
    %119 = vmatprep.subr.mxu0 0.0
    %120 = vmatpush1.msra.mxu0 0.0
    %121 = vmatprep.subr.mxu0 0.0
    %122 = vmatpush1.msra.mxu0 0.0
    %123 = vmatprep.subr.mxu0 0.0
    %124 = vmatpush1.msra.mxu0 0.0
    %125 = vmatprep.subr.mxu0 0.0
    %126 = vmatpush1.msra.mxu0 0.0
    %127 = vmatprep.subr.mxu0 0.0
    %128 = vmatpush1.msra.mxu0 0.0
    %129 = vmatprep.subr.mxu0 0.0
    %130 = vmatpush1.msra.mxu0 0.0
    %131 = vmatprep.subr.mxu0 0.0
    %132 = vmatpush1.msra.mxu0 0.0
    %133 = vmatprep.subr.mxu0 0.0
    %134 = vmatpush1.msra.mxu0 0.0
    %135 = vmatprep.subr.mxu0 0.0
    %136 = vmatpush1.msra.mxu0 0.0
    %137 = vmatprep.subr.mxu0 0.0
    %138 = vmatpush1.msra.mxu0 0.0
    %139 = vmatprep.subr.mxu0 0.0
    %140 = vmatpush1.msra.mxu0 0.0
    %141 = vmatprep.subr.mxu0 0.0
    %142 = vmatpush1.msra.mxu0 0.0
    %143 = vmatprep.subr.mxu0 0.0
    %144 = vmatpush1.msra.mxu0 0.0
    %145 = vmatprep.subr.mxu0 0.0
    %146 = vmatpush1.msra.mxu0 0.0
    %147 = vmatprep.subr.mxu0 0.0
    %148 = vmatpush1.msra.mxu0 0.0
    %149 = vmatprep.subr.mxu0 0.0
    %150 = vmatpush1.msra.mxu0 0.0
    %151 = vmatprep.mubr.f32.mxu0 0.0
    %152 = vmatmul.mubr.f32.gmra.mrb[0].mxu0 %v55
    %v153 = vpop.f32.mrb[0].mxu0
    %v154 = vadd.f32 0.0, %v153
    %v155 = vpop.f32.mrb[0].mxu0
    %156 = vmatprep.mubr.f32.mxu0 0.0
    %157 = vmatmul.mubr.f32.gmra.mrb[0].mxu0 %v56
    %v158 = vpop.f32.mrb[0].mxu0
    %v159 = vadd.f32 0.0, %v158
    %v160 = vpop.f32.mrb[0].mxu0
    %161 = vmatprep.mubr.f32.mxu0 0.0
    %162 = vmatmul.mubr.f32.gmra.mrb[0].mxu0 %v57
    %v163 = vpop.f32.mrb[0].mxu0
    %v164 = vadd.f32 0.0, %v163
    %v165 = vpop.f32.mrb[0].mxu0
    %166 = vmatprep.mubr.f32.mxu0 0.0
    %167 = vmatmul.mubr.f32.gmra.mrb[0].mxu0 %v58
    %v168 = vpop.f32.mrb[0].mxu0
    %v169 = vadd.f32 0.0, %v168
    %v170 = vpop.f32.mrb[0].mxu0
    %171 = vmatprep.mubr.f32.mxu0 0.0
    %172 = vmatmul.mubr.f32.gmra.mrb[0].mxu0 %v59
    %v173 = vpop.f32.mrb[0].mxu0
    %v174 = vadd.f32 0.0, %v173
    %v175 = vpop.f32.mrb[0].mxu0
    %176 = vmatprep.mubr.f32.mxu0 0.0
    %177 = vmatmul.mubr.f32.gmra.mrb[0].mxu0 %v60
    %v178 = vpop.f32.mrb[0].mxu0
    %v179 = vadd.f32 0.0, %v178
    %v180 = vpop.f32.mrb[0].mxu0
    %181 = vmatprep.mubr.f32.mxu0 0.0
    %182 = vmatmul.mubr.f32.gmra.mrb[0].mxu0 %v61
    %v183 = vpop.f32.mrb[0].mxu0
    %v184 = vadd.f32 0.0, %v183
    %v185 = vpop.f32.mrb[0].mxu0
    %186 = vmatprep.mubr.f32.mxu0 0.0
    %187 = vmatmul.mubr.f32.gmra.mrb[0].mxu0 %v62
    %v188 = vpop.f32.mrb[0].mxu0
    %v189 = vadd.f32 0.0, %v188
    %v190 = vpop.f32.mrb[0].mxu0
    %191 = vmatprep.mubr.f32.mxu0 0.0
    %192 = vmatmul.mubr.f32.gmra.mrb[0].mxu0 %v63
    %v193 = vpop.f32.mrb[0].mxu0
    %v194 = vadd.f32 0.0, %v193
    %v195 = vpop.f32.mrb[0].mxu0
    %196 = vmatprep.mubr.f32.mxu0 0.0
    %197 = vmatmul.mubr.f32.gmra.mrb[0].mxu0 %v64
    %v198 = vpop.f32.mrb[0].mxu0
    %v199 = vadd.f32 0.0, %v198
    %v200 = vpop.f32.mrb[0].mxu0
    %201 = vmatprep.mubr.f32.mxu0 0.0
    %202 = vmatmul.mubr.f32.gmra.mrb[0].mxu0 %v65
    %v203 = vpop.f32.mrb[0].mxu0
    %v204 = vadd.f32 0.0, %v203
    %v205 = vpop.f32.mrb[0].mxu0
    %206 = vmatprep.mubr.f32.mxu0 0.0
    %207 = vmatmul.mubr.f32.gmra.mrb[0].mxu0 %v66
    %v208 = vpop.f32.mrb[0].mxu0
    %v209 = vadd.f32 0.0, %v208
    %v210 = vpop.f32.mrb[0].mxu0
    %211 = vmatprep.mubr.f32.mxu0 0.0
    %212 = vmatmul.mubr.f32.gmra.mrb[0].mxu0 %v67
    %v213 = vpop.f32.mrb[0].mxu0
    %v214 = vadd.f32 0.0, %v213
    %v215 = vpop.f32.mrb[0].mxu0
    %216 = vmatprep.mubr.f32.mxu0 0.0
    %217 = vmatmul.mubr.f32.gmra.mrb[0].mxu0 %v68
    %v218 = vpop.f32.mrb[0].mxu0
    %v219 = vadd.f32 0.0, %v218
    %v220 = vpop.f32.mrb[0].mxu0
    %221 = vmatprep.mubr.f32.mxu0 0.0
    %222 = vmatmul.mubr.f32.gmra.mrb[0].mxu0 %v69
    %v223 = vpop.f32.mrb[0].mxu0
    %v224 = vadd.f32 0.0, %v223
    %v225 = vpop.f32.mrb[0].mxu0
    %226 = vmatprep.mubr.f32.mxu0 0.0
    %227 = vmatmul.mubr.f32.gmra.mrb[0].mxu0 %v70
    %v228 = vpop.f32.mrb[0].mxu0
    %v229 = vadd.f32 0.0, %v228
    %v230 = vpop.f32.mrb[0].mxu0
    %231 = vdwg.mxu0
    %v232 = vld [vmem:[%s4] sm:$0x1]
    %v234 = vlaneseq
    %v235 = vshrl.u32 %v234, 7
    %v236 = vsub.s32 0, %v235
    %v237 = vrot.slane %v232, %v236
    %239 = vmatprep.subr.mxu0 0.0
    %240 = vmatpush1.msra.mxu0 %v154
    %241 = vmatprep.subr.mxu0 0.0
    %242 = vmatpush1.msra.mxu0 %v159
    %243 = vmatprep.subr.mxu0 0.0
    %244 = vmatpush1.msra.mxu0 %v164
    %245 = vmatprep.subr.mxu0 0.0
    %246 = vmatpush1.msra.mxu0 %v169
    %247 = vmatprep.subr.mxu0 0.0
    %248 = vmatpush1.msra.mxu0 %v174
    %249 = vmatprep.subr.mxu0 0.0
    %250 = vmatpush1.msra.mxu0 %v179
    %251 = vmatprep.subr.mxu0 0.0
    %252 = vmatpush1.msra.mxu0 %v184
    %253 = vmatprep.subr.mxu0 0.0
    %254 = vmatpush1.msra.mxu0 %v189
    %255 = vmatprep.subr.mxu0 0.0
    %256 = vmatpush1.msra.mxu0 %v194
    %257 = vmatprep.subr.mxu0 0.0
    %258 = vmatpush1.msra.mxu0 %v199
    %259 = vmatprep.subr.mxu0 0.0
    %260 = vmatpush1.msra.mxu0 %v204
    %261 = vmatprep.subr.mxu0 0.0
    %262 = vmatpush1.msra.mxu0 %v209
    %263 = vmatprep.subr.mxu0 0.0
    %264 = vmatpush1.msra.mxu0 %v214
    %265 = vmatprep.subr.mxu0 0.0
    %266 = vmatpush1.msra.mxu0 %v219
    %267 = vmatprep.subr.mxu0 0.0
    %268 = vmatpush1.msra.mxu0 %v224
    %269 = vmatprep.subr.mxu0 0.0
    %270 = vmatpush1.msra.mxu0 %v229
    %271 = vmatprep.subr.mxu0 0.0
    %272 = vmatpush1.msra.mxu0 0.0
    %273 = vmatprep.subr.mxu0 0.0
    %274 = vmatpush1.msra.mxu0 0.0
    %275 = vmatprep.subr.mxu0 0.0
    %276 = vmatpush1.msra.mxu0 0.0
    %277 = vmatprep.subr.mxu0 0.0
    %278 = vmatpush1.msra.mxu0 0.0
    %279 = vmatprep.subr.mxu0 0.0
    %280 = vmatpush1.msra.mxu0 0.0
    %281 = vmatprep.subr.mxu0 0.0
    %282 = vmatpush1.msra.mxu0 0.0
    %283 = vmatprep.subr.mxu0 0.0
    %284 = vmatpush1.msra.mxu0 0.0
    %285 = vmatprep.subr.mxu0 0.0
    %286 = vmatpush1.msra.mxu0 0.0
    %287 = vmatprep.subr.mxu0 0.0
    %288 = vmatpush1.msra.mxu0 0.0
    %289 = vmatprep.subr.mxu0 0.0
    %290 = vmatpush1.msra.mxu0 0.0
    %291 = vmatprep.subr.mxu0 0.0
    %292 = vmatpush1.msra.mxu0 0.0
    %293 = vmatprep.subr.mxu0 0.0
    %294 = vmatpush1.msra.mxu0 0.0
    %295 = vmatprep.subr.mxu0 0.0
    %296 = vmatpush1.msra.mxu0 0.0
    %297 = vmatprep.subr.mxu0 0.0
    %298 = vmatpush1.msra.mxu0 0.0
    %299 = vmatprep.subr.mxu0 0.0
    %300 = vmatpush1.msra.mxu0 0.0
    %301 = vmatprep.subr.mxu0 0.0
    %302 = vmatpush1.msra.mxu0 0.0
    %303 = vmatprep.mubr.f32.mxu0 0.0
    %304 = vmatmul.mubr.f32.gmra.mrb[0].mxu0 %v39
    %v305 = vpop.f32.mrb[0].mxu0
    %v306 = vadd.f32 %v237, %v305
    %v307 = vpop.f32.mrb[0].mxu0
    %308 = vmatprep.mubr.f32.mxu0 0.0
    %309 = vmatmul.mubr.f32.gmra.mrb[0].mxu0 %v40
    %v310 = vpop.f32.mrb[0].mxu0
    %v311 = vadd.f32 %v237, %v310
    %v312 = vpop.f32.mrb[0].mxu0
    %313 = vmatprep.mubr.f32.mxu0 0.0
    %314 = vmatmul.mubr.f32.gmra.mrb[0].mxu0 %v41
    %v315 = vpop.f32.mrb[0].mxu0
    %v316 = vadd.f32 %v237, %v315
    %v317 = vpop.f32.mrb[0].mxu0
    %318 = vmatprep.mubr.f32.mxu0 0.0
    %319 = vmatmul.mubr.f32.gmra.mrb[0].mxu0 %v42
    %v320 = vpop.f32.mrb[0].mxu0
    %v321 = vadd.f32 %v237, %v320
    %v322 = vpop.f32.mrb[0].mxu0
    %323 = vmatprep.mubr.f32.mxu0 0.0
    %324 = vmatmul.mubr.f32.gmra.mrb[0].mxu0 %v43
    %v325 = vpop.f32.mrb[0].mxu0
    %v326 = vadd.f32 %v237, %v325
    %v327 = vpop.f32.mrb[0].mxu0
    %328 = vmatprep.mubr.f32.mxu0 0.0
    %329 = vmatmul.mubr.f32.gmra.mrb[0].mxu0 %v44
    %v330 = vpop.f32.mrb[0].mxu0
    %v331 = vadd.f32 %v237, %v330
    %v332 = vpop.f32.mrb[0].mxu0
    %333 = vmatprep.mubr.f32.mxu0 0.0
    %334 = vmatmul.mubr.f32.gmra.mrb[0].mxu0 %v45
    %v335 = vpop.f32.mrb[0].mxu0
    %v336 = vadd.f32 %v237, %v335
    %v337 = vpop.f32.mrb[0].mxu0
    %338 = vmatprep.mubr.f32.mxu0 0.0
    %339 = vmatmul.mubr.f32.gmra.mrb[0].mxu0 %v46
    %v340 = vpop.f32.mrb[0].mxu0
    %v341 = vadd.f32 %v237, %v340
    %v342 = vpop.f32.mrb[0].mxu0
    %343 = vmatprep.mubr.f32.mxu0 0.0
    %344 = vmatmul.mubr.f32.gmra.mrb[0].mxu0 %v47
    %v345 = vpop.f32.mrb[0].mxu0
    %v346 = vadd.f32 %v237, %v345
    %v347 = vpop.f32.mrb[0].mxu0
    %348 = vmatprep.mubr.f32.mxu0 0.0
    %349 = vmatmul.mubr.f32.gmra.mrb[0].mxu0 %v48
    %v350 = vpop.f32.mrb[0].mxu0
    %v351 = vadd.f32 %v237, %v350
    %v352 = vpop.f32.mrb[0].mxu0
    %353 = vmatprep.mubr.f32.mxu0 0.0
    %354 = vmatmul.mubr.f32.gmra.mrb[0].mxu0 %v49
    %v355 = vpop.f32.mrb[0].mxu0
    %v356 = vadd.f32 %v237, %v355
    %v357 = vpop.f32.mrb[0].mxu0
    %358 = vmatprep.mubr.f32.mxu0 0.0
    %359 = vmatmul.mubr.f32.gmra.mrb[0].mxu0 %v50
    %v360 = vpop.f32.mrb[0].mxu0
    %v361 = vadd.f32 %v237, %v360
    %v362 = vpop.f32.mrb[0].mxu0
    %363 = vmatprep.mubr.f32.mxu0 0.0
    %364 = vmatmul.mubr.f32.gmra.mrb[0].mxu0 %v51
    %v365 = vpop.f32.mrb[0].mxu0
    %v366 = vadd.f32 %v237, %v365
    %v367 = vpop.f32.mrb[0].mxu0
    %368 = vmatprep.mubr.f32.mxu0 0.0
    %369 = vmatmul.mubr.f32.gmra.mrb[0].mxu0 %v52
    %v370 = vpop.f32.mrb[0].mxu0
    %v371 = vadd.f32 %v237, %v370
    %v372 = vpop.f32.mrb[0].mxu0
    %373 = vmatprep.mubr.f32.mxu0 0.0
    %374 = vmatmul.mubr.f32.gmra.mrb[0].mxu0 %v53
    %v375 = vpop.f32.mrb[0].mxu0
    %v376 = vadd.f32 %v237, %v375
    %v377 = vpop.f32.mrb[0].mxu0
    %378 = vmatprep.mubr.f32.mxu0 0.0
    %379 = vmatmul.mubr.f32.gmra.mrb[0].mxu0 %v54
    %v380 = vpop.f32.mrb[0].mxu0
    %v381 = vadd.f32 %v237, %v380
    %v382 = vpop.f32.mrb[0].mxu0
    %383 = vdwg.mxu0
    %v384 = vmax.f32 %v306, 0.0
    %v385 = vmax.f32 %v311, 0.0
    %v386 = vmax.f32 %v316, 0.0
    %v387 = vmax.f32 %v321, 0.0
    %v388 = vmax.f32 %v326, 0.0
    %v389 = vmax.f32 %v331, 0.0
    %v390 = vmax.f32 %v336, 0.0
    %v391 = vmax.f32 %v341, 0.0
    %v392 = vmax.f32 %v346, 0.0
    %v393 = vmax.f32 %v351, 0.0
    %v394 = vmax.f32 %v356, 0.0
    %v395 = vmax.f32 %v361, 0.0
    %v396 = vmax.f32 %v366, 0.0
    %v397 = vmax.f32 %v371, 0.0
    %v398 = vmax.f32 %v376, 0.0
    %v399 = vmax.f32 %v381, 0.0
    %v400 = vld [vmem:[%s5] sm:$0xff]
    %v401 = vld [vmem:[%s5 + $0x8] sm:$0xff]
    %v402 = vld [vmem:[%s5 + $0x10] sm:$0xff]
    %v403 = vld [vmem:[%s5 + $0x18] sm:$0xff]
    %v404 = vld [vmem:[%s5 + $0x20] sm:$0xff]
    %v405 = vld [vmem:[%s5 + $0x28] sm:$0xff]
    %v406 = vld [vmem:[%s5 + $0x30] sm:$0xff]
    %v407 = vld [vmem:[%s5 + $0x38] sm:$0xff]
    %v408 = vld [vmem:[%s5 + $0x40] sm:$0xff]
    %v409 = vld [vmem:[%s5 + $0x48] sm:$0xff]
    %v410 = vld [vmem:[%s5 + $0x50] sm:$0xff]
    %v411 = vld [vmem:[%s5 + $0x58] sm:$0xff]
    %v412 = vld [vmem:[%s5 + $0x60] sm:$0xff]
    %v413 = vld [vmem:[%s5 + $0x68] sm:$0xff]
    %v414 = vld [vmem:[%s5 + $0x70] sm:$0xff]
    %v415 = vld [vmem:[%s5 + $0x78] sm:$0xff]
    %416 = vmatprep.subr.mxu0 0.0
    %417 = vmatpush1.msra.mxu0 %v400
    %418 = vmatprep.subr.mxu0 0.0
    %419 = vmatpush1.msra.mxu0 %v401
    %420 = vmatprep.subr.mxu0 0.0
    %421 = vmatpush1.msra.mxu0 %v402
    %422 = vmatprep.subr.mxu0 0.0
    %423 = vmatpush1.msra.mxu0 %v403
    %424 = vmatprep.subr.mxu0 0.0
    %425 = vmatpush1.msra.mxu0 %v404
    %426 = vmatprep.subr.mxu0 0.0
    %427 = vmatpush1.msra.mxu0 %v405
    %428 = vmatprep.subr.mxu0 0.0
    %429 = vmatpush1.msra.mxu0 %v406
    %430 = vmatprep.subr.mxu0 0.0
    %431 = vmatpush1.msra.mxu0 %v407
    %432 = vmatprep.subr.mxu0 0.0
    %433 = vmatpush1.msra.mxu0 %v408
    %434 = vmatprep.subr.mxu0 0.0
    %435 = vmatpush1.msra.mxu0 %v409
    %436 = vmatprep.subr.mxu0 0.0
    %437 = vmatpush1.msra.mxu0 %v410
    %438 = vmatprep.subr.mxu0 0.0
    %439 = vmatpush1.msra.mxu0 %v411
    %440 = vmatprep.subr.mxu0 0.0
    %441 = vmatpush1.msra.mxu0 %v412
    %442 = vmatprep.subr.mxu0 0.0
    %443 = vmatpush1.msra.mxu0 %v413
    %444 = vmatprep.subr.mxu0 0.0
    %445 = vmatpush1.msra.mxu0 %v414
    %446 = vmatprep.subr.mxu0 0.0
    %447 = vmatpush1.msra.mxu0 %v415
    %448 = vmatprep.subr.mxu0 0.0
    %449 = vmatpush1.msra.mxu0 0.0
    %450 = vmatprep.subr.mxu0 0.0
    %451 = vmatpush1.msra.mxu0 0.0
    %452 = vmatprep.subr.mxu0 0.0
    %453 = vmatpush1.msra.mxu0 0.0
    %454 = vmatprep.subr.mxu0 0.0
    %455 = vmatpush1.msra.mxu0 0.0
    %456 = vmatprep.subr.mxu0 0.0
    %457 = vmatpush1.msra.mxu0 0.0
    %458 = vmatprep.subr.mxu0 0.0
    %459 = vmatpush1.msra.mxu0 0.0
    %460 = vmatprep.subr.mxu0 0.0
    %461 = vmatpush1.msra.mxu0 0.0
    %462 = vmatprep.subr.mxu0 0.0
    %463 = vmatpush1.msra.mxu0 0.0
    %464 = vmatprep.subr.mxu0 0.0
    %465 = vmatpush1.msra.mxu0 0.0
    %466 = vmatprep.subr.mxu0 0.0
    %467 = vmatpush1.msra.mxu0 0.0
    %468 = vmatprep.subr.mxu0 0.0
    %469 = vmatpush1.msra.mxu0 0.0
    %470 = vmatprep.subr.mxu0 0.0
    %471 = vmatpush1.msra.mxu0 0.0
    %472 = vmatprep.subr.mxu0 0.0
    %473 = vmatpush1.msra.mxu0 0.0
    %474 = vmatprep.subr.mxu0 0.0
    %475 = vmatpush1.msra.mxu0 0.0
    %476 = vmatprep.subr.mxu0 0.0
    %477 = vmatpush1.msra.mxu0 0.0
    %478 = vmatprep.subr.mxu0 0.0
    %479 = vmatpush1.msra.mxu0 0.0
    %480 = vmatprep.mubr.f32.mxu0 0.0
    %481 = vmatmul.mubr.f32.gmra.mrb[0].mxu0 %v384
    %v482 = vpop.f32.mrb[0].mxu0
    %v483 = vadd.f32 0.0, %v482
    %v484 = vpop.f32.mrb[0].mxu0
    %485 = vmatprep.mubr.f32.mxu0 0.0
    %486 = vmatmul.mubr.f32.gmra.mrb[0].mxu0 %v385
    %v487 = vpop.f32.mrb[0].mxu0
    %v488 = vadd.f32 0.0, %v487
    %v489 = vpop.f32.mrb[0].mxu0
    %490 = vmatprep.mubr.f32.mxu0 0.0
    %491 = vmatmul.mubr.f32.gmra.mrb[0].mxu0 %v386
    %v492 = vpop.f32.mrb[0].mxu0
    %v493 = vadd.f32 0.0, %v492
    %v494 = vpop.f32.mrb[0].mxu0
    %495 = vmatprep.mubr.f32.mxu0 0.0
    %496 = vmatmul.mubr.f32.gmra.mrb[0].mxu0 %v387
    %v497 = vpop.f32.mrb[0].mxu0
    %v498 = vadd.f32 0.0, %v497
    %v499 = vpop.f32.mrb[0].mxu0
    %500 = vmatprep.mubr.f32.mxu0 0.0
    %501 = vmatmul.mubr.f32.gmra.mrb[0].mxu0 %v388
    %v502 = vpop.f32.mrb[0].mxu0
    %v503 = vadd.f32 0.0, %v502
    %v504 = vpop.f32.mrb[0].mxu0
    %505 = vmatprep.mubr.f32.mxu0 0.0
    %506 = vmatmul.mubr.f32.gmra.mrb[0].mxu0 %v389
    %v507 = vpop.f32.mrb[0].mxu0
    %v508 = vadd.f32 0.0, %v507
    %v509 = vpop.f32.mrb[0].mxu0
    %510 = vmatprep.mubr.f32.mxu0 0.0
    %511 = vmatmul.mubr.f32.gmra.mrb[0].mxu0 %v390
    %v512 = vpop.f32.mrb[0].mxu0
    %v513 = vadd.f32 0.0, %v512
    %v514 = vpop.f32.mrb[0].mxu0
    %515 = vmatprep.mubr.f32.mxu0 0.0
    %516 = vmatmul.mubr.f32.gmra.mrb[0].mxu0 %v391
    %v517 = vpop.f32.mrb[0].mxu0
    %v518 = vadd.f32 0.0, %v517
    %v519 = vpop.f32.mrb[0].mxu0
    %520 = vmatprep.mubr.f32.mxu0 0.0
    %521 = vmatmul.mubr.f32.gmra.mrb[0].mxu0 %v392
    %v522 = vpop.f32.mrb[0].mxu0
    %v523 = vadd.f32 0.0, %v522
    %v524 = vpop.f32.mrb[0].mxu0
    %525 = vmatprep.mubr.f32.mxu0 0.0
    %526 = vmatmul.mubr.f32.gmra.mrb[0].mxu0 %v393
    %v527 = vpop.f32.mrb[0].mxu0
    %v528 = vadd.f32 0.0, %v527
    %v529 = vpop.f32.mrb[0].mxu0
    %530 = vmatprep.mubr.f32.mxu0 0.0
    %531 = vmatmul.mubr.f32.gmra.mrb[0].mxu0 %v394
    %v532 = vpop.f32.mrb[0].mxu0
    %v533 = vadd.f32 0.0, %v532
    %v534 = vpop.f32.mrb[0].mxu0
    %535 = vmatprep.mubr.f32.mxu0 0.0
    %536 = vmatmul.mubr.f32.gmra.mrb[0].mxu0 %v395
    %v537 = vpop.f32.mrb[0].mxu0
    %v538 = vadd.f32 0.0, %v537
    %v539 = vpop.f32.mrb[0].mxu0
    %540 = vmatprep.mubr.f32.mxu0 0.0
    %541 = vmatmul.mubr.f32.gmra.mrb[0].mxu0 %v396
    %v542 = vpop.f32.mrb[0].mxu0
    %v543 = vadd.f32 0.0, %v542
    %v544 = vpop.f32.mrb[0].mxu0
    %545 = vmatprep.mubr.f32.mxu0 0.0
    %546 = vmatmul.mubr.f32.gmra.mrb[0].mxu0 %v397
    %v547 = vpop.f32.mrb[0].mxu0
    %v548 = vadd.f32 0.0, %v547
    %v549 = vpop.f32.mrb[0].mxu0
    %550 = vmatprep.mubr.f32.mxu0 0.0
    %551 = vmatmul.mubr.f32.gmra.mrb[0].mxu0 %v398
    %v552 = vpop.f32.mrb[0].mxu0
    %v553 = vadd.f32 0.0, %v552
    %v554 = vpop.f32.mrb[0].mxu0
    %555 = vmatprep.mubr.f32.mxu0 0.0
    %556 = vmatmul.mubr.f32.gmra.mrb[0].mxu0 %v399
    %v557 = vpop.f32.mrb[0].mxu0
    %v558 = vadd.f32 0.0, %v557
    %v559 = vpop.f32.mrb[0].mxu0
    %560 = vdwg.mxu0
    %v561 = vld [vmem:[%s6] sm:$0x1]
    %v563 = vlaneseq
    %v564 = vshrl.u32 %v563, 7
    %v565 = vsub.s32 0, %v564
    %v566 = vrot.slane %v561, %v565
    %568 = vmatprep.subr.mxu0 0.0
    %569 = vmatpush1.msra.mxu0 %v483
    %570 = vmatprep.subr.mxu0 0.0
    %571 = vmatpush1.msra.mxu0 %v488
    %572 = vmatprep.subr.mxu0 0.0
    %573 = vmatpush1.msra.mxu0 %v493
    %574 = vmatprep.subr.mxu0 0.0
    %575 = vmatpush1.msra.mxu0 %v498
    %576 = vmatprep.subr.mxu0 0.0
    %577 = vmatpush1.msra.mxu0 %v503
    %578 = vmatprep.subr.mxu0 0.0
    %579 = vmatpush1.msra.mxu0 %v508
    %580 = vmatprep.subr.mxu0 0.0
    %581 = vmatpush1.msra.mxu0 %v513
    %582 = vmatprep.subr.mxu0 0.0
    %583 = vmatpush1.msra.mxu0 %v518
    %584 = vmatprep.subr.mxu0 0.0
    %585 = vmatpush1.msra.mxu0 %v523
    %586 = vmatprep.subr.mxu0 0.0
    %587 = vmatpush1.msra.mxu0 %v528
    %588 = vmatprep.subr.mxu0 0.0
    %589 = vmatpush1.msra.mxu0 %v533
    %590 = vmatprep.subr.mxu0 0.0
    %591 = vmatpush1.msra.mxu0 %v538
    %592 = vmatprep.subr.mxu0 0.0
    %593 = vmatpush1.msra.mxu0 %v543
    %594 = vmatprep.subr.mxu0 0.0
    %595 = vmatpush1.msra.mxu0 %v548
    %596 = vmatprep.subr.mxu0 0.0
    %597 = vmatpush1.msra.mxu0 %v553
    %598 = vmatprep.subr.mxu0 0.0
    %599 = vmatpush1.msra.mxu0 %v558
    %600 = vmatprep.subr.mxu0 0.0
    %601 = vmatpush1.msra.mxu0 0.0
    %602 = vmatprep.subr.mxu0 0.0
    %603 = vmatpush1.msra.mxu0 0.0
    %604 = vmatprep.subr.mxu0 0.0
    %605 = vmatpush1.msra.mxu0 0.0
    %606 = vmatprep.subr.mxu0 0.0
    %607 = vmatpush1.msra.mxu0 0.0
    %608 = vmatprep.subr.mxu0 0.0
    %609 = vmatpush1.msra.mxu0 0.0
    %610 = vmatprep.subr.mxu0 0.0
    %611 = vmatpush1.msra.mxu0 0.0
    %612 = vmatprep.subr.mxu0 0.0
    %613 = vmatpush1.msra.mxu0 0.0
    %614 = vmatprep.subr.mxu0 0.0
    %615 = vmatpush1.msra.mxu0 0.0
    %616 = vmatprep.subr.mxu0 0.0
    %617 = vmatpush1.msra.mxu0 0.0
    %618 = vmatprep.subr.mxu0 0.0
    %619 = vmatpush1.msra.mxu0 0.0
    %620 = vmatprep.subr.mxu0 0.0
    %621 = vmatpush1.msra.mxu0 0.0
    %622 = vmatprep.subr.mxu0 0.0
    %623 = vmatpush1.msra.mxu0 0.0
    %624 = vmatprep.subr.mxu0 0.0
    %625 = vmatpush1.msra.mxu0 0.0
    %626 = vmatprep.subr.mxu0 0.0
    %627 = vmatpush1.msra.mxu0 0.0
    %628 = vmatprep.subr.mxu0 0.0
    %629 = vmatpush1.msra.mxu0 0.0
    %630 = vmatprep.subr.mxu0 0.0
    %631 = vmatpush1.msra.mxu0 0.0
    %632 = vmatprep.mubr.f32.mxu0 0.0
    %633 = vmatmul.mubr.f32.gmra.mrb[0].mxu0 %v39
    %v634 = vpop.f32.mrb[0].mxu0
    %v635 = vadd.f32 %v566, %v634
    %v636 = vpop.f32.mrb[0].mxu0
    %637 = vmatprep.mubr.f32.mxu0 0.0
    %638 = vmatmul.mubr.f32.gmra.mrb[0].mxu0 %v40
    %v639 = vpop.f32.mrb[0].mxu0
    %v640 = vadd.f32 %v566, %v639
    %v641 = vpop.f32.mrb[0].mxu0
    %642 = vmatprep.mubr.f32.mxu0 0.0
    %643 = vmatmul.mubr.f32.gmra.mrb[0].mxu0 %v41
    %v644 = vpop.f32.mrb[0].mxu0
    %v645 = vadd.f32 %v566, %v644
    %v646 = vpop.f32.mrb[0].mxu0
    %647 = vmatprep.mubr.f32.mxu0 0.0
    %648 = vmatmul.mubr.f32.gmra.mrb[0].mxu0 %v42
    %v649 = vpop.f32.mrb[0].mxu0
    %v650 = vadd.f32 %v566, %v649
    %v651 = vpop.f32.mrb[0].mxu0
    %652 = vmatprep.mubr.f32.mxu0 0.0
    %653 = vmatmul.mubr.f32.gmra.mrb[0].mxu0 %v43
    %v654 = vpop.f32.mrb[0].mxu0
    %v655 = vadd.f32 %v566, %v654
    %v656 = vpop.f32.mrb[0].mxu0
    %657 = vmatprep.mubr.f32.mxu0 0.0
    %658 = vmatmul.mubr.f32.gmra.mrb[0].mxu0 %v44
    %v659 = vpop.f32.mrb[0].mxu0
    %v660 = vadd.f32 %v566, %v659
    %v661 = vpop.f32.mrb[0].mxu0
    %662 = vmatprep.mubr.f32.mxu0 0.0
    %663 = vmatmul.mubr.f32.gmra.mrb[0].mxu0 %v45
    %v664 = vpop.f32.mrb[0].mxu0
    %v665 = vadd.f32 %v566, %v664
    %v666 = vpop.f32.mrb[0].mxu0
    %667 = vmatprep.mubr.f32.mxu0 0.0
    %668 = vmatmul.mubr.f32.gmra.mrb[0].mxu0 %v46
    %v669 = vpop.f32.mrb[0].mxu0
    %v670 = vadd.f32 %v566, %v669
    %v671 = vpop.f32.mrb[0].mxu0
    %672 = vmatprep.mubr.f32.mxu0 0.0
    %673 = vmatmul.mubr.f32.gmra.mrb[0].mxu0 %v47
    %v674 = vpop.f32.mrb[0].mxu0
    %v675 = vadd.f32 %v566, %v674
    %v676 = vpop.f32.mrb[0].mxu0
    %677 = vmatprep.mubr.f32.mxu0 0.0
    %678 = vmatmul.mubr.f32.gmra.mrb[0].mxu0 %v48
    %v679 = vpop.f32.mrb[0].mxu0
    %v680 = vadd.f32 %v566, %v679
    %v681 = vpop.f32.mrb[0].mxu0
    %682 = vmatprep.mubr.f32.mxu0 0.0
    %683 = vmatmul.mubr.f32.gmra.mrb[0].mxu0 %v49
    %v684 = vpop.f32.mrb[0].mxu0
    %v685 = vadd.f32 %v566, %v684
    %v686 = vpop.f32.mrb[0].mxu0
    %687 = vmatprep.mubr.f32.mxu0 0.0
    %688 = vmatmul.mubr.f32.gmra.mrb[0].mxu0 %v50
    %v689 = vpop.f32.mrb[0].mxu0
    %v690 = vadd.f32 %v566, %v689
    %v691 = vpop.f32.mrb[0].mxu0
    %692 = vmatprep.mubr.f32.mxu0 0.0
    %693 = vmatmul.mubr.f32.gmra.mrb[0].mxu0 %v51
    %v694 = vpop.f32.mrb[0].mxu0
    %v695 = vadd.f32 %v566, %v694
    %v696 = vpop.f32.mrb[0].mxu0
    %697 = vmatprep.mubr.f32.mxu0 0.0
    %698 = vmatmul.mubr.f32.gmra.mrb[0].mxu0 %v52
    %v699 = vpop.f32.mrb[0].mxu0
    %v700 = vadd.f32 %v566, %v699
    %v701 = vpop.f32.mrb[0].mxu0
    %702 = vmatprep.mubr.f32.mxu0 0.0
    %703 = vmatmul.mubr.f32.gmra.mrb[0].mxu0 %v53
    %v704 = vpop.f32.mrb[0].mxu0
    %v705 = vadd.f32 %v566, %v704
    %v706 = vpop.f32.mrb[0].mxu0
    %707 = vmatprep.mubr.f32.mxu0 0.0
    %708 = vmatmul.mubr.f32.gmra.mrb[0].mxu0 %v54
    %v709 = vpop.f32.mrb[0].mxu0
    %v710 = vadd.f32 %v566, %v709
    %v711 = vpop.f32.mrb[0].mxu0
    %712 = vdwg.mxu0
    %v713 = vmax.f32 %v635, 0.0
    %v714 = vmax.f32 %v640, 0.0
    %v715 = vmax.f32 %v645, 0.0
    %v716 = vmax.f32 %v650, 0.0
    %v717 = vmax.f32 %v655, 0.0
    %v718 = vmax.f32 %v660, 0.0
    %v719 = vmax.f32 %v665, 0.0
    %v720 = vmax.f32 %v670, 0.0
    %v721 = vmax.f32 %v675, 0.0
    %v722 = vmax.f32 %v680, 0.0
    %v723 = vmax.f32 %v685, 0.0
    %v724 = vmax.f32 %v690, 0.0
    %v725 = vmax.f32 %v695, 0.0
    %v726 = vmax.f32 %v700, 0.0
    %v727 = vmax.f32 %v705, 0.0
    %v728 = vmax.f32 %v710, 0.0
    %v729 = vld [vmem:[%s7] sm:$0xff]
    %v730 = vld [vmem:[%s7 + $0x8] sm:$0xff]
    %v731 = vld [vmem:[%s7 + $0x10] sm:$0xff]
    %v732 = vld [vmem:[%s7 + $0x18] sm:$0xff]
    %v733 = vld [vmem:[%s7 + $0x20] sm:$0xff]
    %v734 = vld [vmem:[%s7 + $0x28] sm:$0xff]
    %v735 = vld [vmem:[%s7 + $0x30] sm:$0xff]
    %v736 = vld [vmem:[%s7 + $0x38] sm:$0xff]
    %v737 = vld [vmem:[%s7 + $0x40] sm:$0xff]
    %v738 = vld [vmem:[%s7 + $0x48] sm:$0xff]
    %v739 = vld [vmem:[%s7 + $0x50] sm:$0xff]
    %v740 = vld [vmem:[%s7 + $0x58] sm:$0xff]
    %v741 = vld [vmem:[%s7 + $0x60] sm:$0xff]
    %v742 = vld [vmem:[%s7 + $0x68] sm:$0xff]
    %v743 = vld [vmem:[%s7 + $0x70] sm:$0xff]
    %v744 = vld [vmem:[%s7 + $0x78] sm:$0xff]
    %745 = vmatprep.subr.mxu0 0.0
    %746 = vmatpush1.msra.mxu0 %v729
    %747 = vmatprep.subr.mxu0 0.0
    %748 = vmatpush1.msra.mxu0 %v730
    %749 = vmatprep.subr.mxu0 0.0
    %750 = vmatpush1.msra.mxu0 %v731
    %751 = vmatprep.subr.mxu0 0.0
    %752 = vmatpush1.msra.mxu0 %v732
    %753 = vmatprep.subr.mxu0 0.0
    %754 = vmatpush1.msra.mxu0 %v733
    %755 = vmatprep.subr.mxu0 0.0
    %756 = vmatpush1.msra.mxu0 %v734
    %757 = vmatprep.subr.mxu0 0.0
    %758 = vmatpush1.msra.mxu0 %v735
    %759 = vmatprep.subr.mxu0 0.0
    %760 = vmatpush1.msra.mxu0 %v736
    %761 = vmatprep.subr.mxu0 0.0
    %762 = vmatpush1.msra.mxu0 %v737
    %763 = vmatprep.subr.mxu0 0.0
    %764 = vmatpush1.msra.mxu0 %v738
    %765 = vmatprep.subr.mxu0 0.0
    %766 = vmatpush1.msra.mxu0 %v739
    %767 = vmatprep.subr.mxu0 0.0
    %768 = vmatpush1.msra.mxu0 %v740
    %769 = vmatprep.subr.mxu0 0.0
    %770 = vmatpush1.msra.mxu0 %v741
    %771 = vmatprep.subr.mxu0 0.0
    %772 = vmatpush1.msra.mxu0 %v742
    %773 = vmatprep.subr.mxu0 0.0
    %774 = vmatpush1.msra.mxu0 %v743
    %775 = vmatprep.subr.mxu0 0.0
    %776 = vmatpush1.msra.mxu0 %v744
    %777 = vmatprep.subr.mxu0 0.0
    %778 = vmatpush1.msra.mxu0 0.0
    %779 = vmatprep.subr.mxu0 0.0
    %780 = vmatpush1.msra.mxu0 0.0
    %781 = vmatprep.subr.mxu0 0.0
    %782 = vmatpush1.msra.mxu0 0.0
    %783 = vmatprep.subr.mxu0 0.0
    %784 = vmatpush1.msra.mxu0 0.0
    %785 = vmatprep.subr.mxu0 0.0
    %786 = vmatpush1.msra.mxu0 0.0
    %787 = vmatprep.subr.mxu0 0.0
    %788 = vmatpush1.msra.mxu0 0.0
    %789 = vmatprep.subr.mxu0 0.0
    %790 = vmatpush1.msra.mxu0 0.0
    %791 = vmatprep.subr.mxu0 0.0
    %792 = vmatpush1.msra.mxu0 0.0
    %793 = vmatprep.subr.mxu0 0.0
    %794 = vmatpush1.msra.mxu0 0.0
    %795 = vmatprep.subr.mxu0 0.0
    %796 = vmatpush1.msra.mxu0 0.0
    %797 = vmatprep.subr.mxu0 0.0
    %798 = vmatpush1.msra.mxu0 0.0
    %799 = vmatprep.subr.mxu0 0.0
    %800 = vmatpush1.msra.mxu0 0.0
    %801 = vmatprep.subr.mxu0 0.0
    %802 = vmatpush1.msra.mxu0 0.0
    %803 = vmatprep.subr.mxu0 0.0
    %804 = vmatpush1.msra.mxu0 0.0
    %805 = vmatprep.subr.mxu0 0.0
    %806 = vmatpush1.msra.mxu0 0.0
    %807 = vmatprep.subr.mxu0 0.0
    %808 = vmatpush1.msra.mxu0 0.0
    %809 = vmatprep.mubr.f32.mxu0 0.0
    %810 = vmatmul.mubr.f32.gmra.mrb[0].mxu0 %v713
    %v811 = vpop.f32.mrb[0].mxu0
    %v812 = vadd.f32 0.0, %v811
    %v813 = vpop.f32.mrb[0].mxu0
    %814 = vmatprep.mubr.f32.mxu0 0.0
    %815 = vmatmul.mubr.f32.gmra.mrb[0].mxu0 %v714
    %v816 = vpop.f32.mrb[0].mxu0
    %v817 = vadd.f32 0.0, %v816
    %v818 = vpop.f32.mrb[0].mxu0
    %819 = vmatprep.mubr.f32.mxu0 0.0
    %820 = vmatmul.mubr.f32.gmra.mrb[0].mxu0 %v715
    %v821 = vpop.f32.mrb[0].mxu0
    %v822 = vadd.f32 0.0, %v821
    %v823 = vpop.f32.mrb[0].mxu0
    %824 = vmatprep.mubr.f32.mxu0 0.0
    %825 = vmatmul.mubr.f32.gmra.mrb[0].mxu0 %v716
    %v826 = vpop.f32.mrb[0].mxu0
    %v827 = vadd.f32 0.0, %v826
    %v828 = vpop.f32.mrb[0].mxu0
    %829 = vmatprep.mubr.f32.mxu0 0.0
    %830 = vmatmul.mubr.f32.gmra.mrb[0].mxu0 %v717
    %v831 = vpop.f32.mrb[0].mxu0
    %v832 = vadd.f32 0.0, %v831
    %v833 = vpop.f32.mrb[0].mxu0
    %834 = vmatprep.mubr.f32.mxu0 0.0
    %835 = vmatmul.mubr.f32.gmra.mrb[0].mxu0 %v718
    %v836 = vpop.f32.mrb[0].mxu0
    %v837 = vadd.f32 0.0, %v836
    %v838 = vpop.f32.mrb[0].mxu0
    %839 = vmatprep.mubr.f32.mxu0 0.0
    %840 = vmatmul.mubr.f32.gmra.mrb[0].mxu0 %v719
    %v841 = vpop.f32.mrb[0].mxu0
    %v842 = vadd.f32 0.0, %v841
    %v843 = vpop.f32.mrb[0].mxu0
    %844 = vmatprep.mubr.f32.mxu0 0.0
    %845 = vmatmul.mubr.f32.gmra.mrb[0].mxu0 %v720
    %v846 = vpop.f32.mrb[0].mxu0
    %v847 = vadd.f32 0.0, %v846
    %v848 = vpop.f32.mrb[0].mxu0
    %849 = vmatprep.mubr.f32.mxu0 0.0
    %850 = vmatmul.mubr.f32.gmra.mrb[0].mxu0 %v721
    %v851 = vpop.f32.mrb[0].mxu0
    %v852 = vadd.f32 0.0, %v851
    %v853 = vpop.f32.mrb[0].mxu0
    %854 = vmatprep.mubr.f32.mxu0 0.0
    %855 = vmatmul.mubr.f32.gmra.mrb[0].mxu0 %v722
    %v856 = vpop.f32.mrb[0].mxu0
    %v857 = vadd.f32 0.0, %v856
    %v858 = vpop.f32.mrb[0].mxu0
    %859 = vmatprep.mubr.f32.mxu0 0.0
    %860 = vmatmul.mubr.f32.gmra.mrb[0].mxu0 %v723
    %v861 = vpop.f32.mrb[0].mxu0
    %v862 = vadd.f32 0.0, %v861
    %v863 = vpop.f32.mrb[0].mxu0
    %864 = vmatprep.mubr.f32.mxu0 0.0
    %865 = vmatmul.mubr.f32.gmra.mrb[0].mxu0 %v724
    %v866 = vpop.f32.mrb[0].mxu0
    %v867 = vadd.f32 0.0, %v866
    %v868 = vpop.f32.mrb[0].mxu0
    %869 = vmatprep.mubr.f32.mxu0 0.0
    %870 = vmatmul.mubr.f32.gmra.mrb[0].mxu0 %v725
    %v871 = vpop.f32.mrb[0].mxu0
    %v872 = vadd.f32 0.0, %v871
    %v873 = vpop.f32.mrb[0].mxu0
    %874 = vmatprep.mubr.f32.mxu0 0.0
    %875 = vmatmul.mubr.f32.gmra.mrb[0].mxu0 %v726
    %v876 = vpop.f32.mrb[0].mxu0
    %v877 = vadd.f32 0.0, %v876
    %v878 = vpop.f32.mrb[0].mxu0
    %879 = vmatprep.mubr.f32.mxu0 0.0
    %880 = vmatmul.mubr.f32.gmra.mrb[0].mxu0 %v727
    %v881 = vpop.f32.mrb[0].mxu0
    %v882 = vadd.f32 0.0, %v881
    %v883 = vpop.f32.mrb[0].mxu0
    %884 = vmatprep.mubr.f32.mxu0 0.0
    %885 = vmatmul.mubr.f32.gmra.mrb[0].mxu0 %v728
    %v886 = vpop.f32.mrb[0].mxu0
    %v887 = vadd.f32 0.0, %v886
    %v888 = vpop.f32.mrb[0].mxu0
    %889 = vdwg.mxu0
    %v890 = vld [vmem:[%s8] sm:$0x1]
    %v892 = vlaneseq
    %v893 = vshrl.u32 %v892, 7
    %v894 = vsub.s32 0, %v893
    %v895 = vrot.slane %v890, %v894
    %897 = vmatprep.subr.mxu0 0.0
    %898 = vmatpush1.msra.mxu0 %v812
    %899 = vmatprep.subr.mxu0 0.0
    %900 = vmatpush1.msra.mxu0 %v817
    %901 = vmatprep.subr.mxu0 0.0
    %902 = vmatpush1.msra.mxu0 %v822
    %903 = vmatprep.subr.mxu0 0.0
    %904 = vmatpush1.msra.mxu0 %v827
    %905 = vmatprep.subr.mxu0 0.0
    %906 = vmatpush1.msra.mxu0 %v832
    %907 = vmatprep.subr.mxu0 0.0
    %908 = vmatpush1.msra.mxu0 %v837
    %909 = vmatprep.subr.mxu0 0.0
    %910 = vmatpush1.msra.mxu0 %v842
    %911 = vmatprep.subr.mxu0 0.0
    %912 = vmatpush1.msra.mxu0 %v847
    %913 = vmatprep.subr.mxu0 0.0
    %914 = vmatpush1.msra.mxu0 %v852
    %915 = vmatprep.subr.mxu0 0.0
    %916 = vmatpush1.msra.mxu0 %v857
    %917 = vmatprep.subr.mxu0 0.0
    %918 = vmatpush1.msra.mxu0 %v862
    %919 = vmatprep.subr.mxu0 0.0
    %920 = vmatpush1.msra.mxu0 %v867
    %921 = vmatprep.subr.mxu0 0.0
    %922 = vmatpush1.msra.mxu0 %v872
    %923 = vmatprep.subr.mxu0 0.0
    %924 = vmatpush1.msra.mxu0 %v877
    %925 = vmatprep.subr.mxu0 0.0
    %926 = vmatpush1.msra.mxu0 %v882
    %927 = vmatprep.subr.mxu0 0.0
    %928 = vmatpush1.msra.mxu0 %v887
    %929 = vmatprep.subr.mxu0 0.0
    %930 = vmatpush1.msra.mxu0 0.0
    %931 = vmatprep.subr.mxu0 0.0
    %932 = vmatpush1.msra.mxu0 0.0
    %933 = vmatprep.subr.mxu0 0.0
    %934 = vmatpush1.msra.mxu0 0.0
    %935 = vmatprep.subr.mxu0 0.0
    %936 = vmatpush1.msra.mxu0 0.0
    %937 = vmatprep.subr.mxu0 0.0
    %938 = vmatpush1.msra.mxu0 0.0
    %939 = vmatprep.subr.mxu0 0.0
    %940 = vmatpush1.msra.mxu0 0.0
    %941 = vmatprep.subr.mxu0 0.0
    %942 = vmatpush1.msra.mxu0 0.0
    %943 = vmatprep.subr.mxu0 0.0
    %944 = vmatpush1.msra.mxu0 0.0
    %945 = vmatprep.subr.mxu0 0.0
    %946 = vmatpush1.msra.mxu0 0.0
    %947 = vmatprep.subr.mxu0 0.0
    %948 = vmatpush1.msra.mxu0 0.0
    %949 = vmatprep.subr.mxu0 0.0
    %950 = vmatpush1.msra.mxu0 0.0
    %951 = vmatprep.subr.mxu0 0.0
    %952 = vmatpush1.msra.mxu0 0.0
    %953 = vmatprep.subr.mxu0 0.0
    %954 = vmatpush1.msra.mxu0 0.0
    %955 = vmatprep.subr.mxu0 0.0
    %956 = vmatpush1.msra.mxu0 0.0
    %957 = vmatprep.subr.mxu0 0.0
    %958 = vmatpush1.msra.mxu0 0.0
    %959 = vmatprep.subr.mxu0 0.0
    %960 = vmatpush1.msra.mxu0 0.0
    %961 = vmatprep.mubr.f32.mxu0 0.0
    %962 = vmatmul.mubr.f32.gmra.mrb[0].mxu0 %v39
    %v963 = vpop.f32.mrb[0].mxu0
    %v964 = vadd.f32 %v895, %v963
    %v965 = vpop.f32.mrb[0].mxu0
    %966 = vmatprep.mubr.f32.mxu0 0.0
    %967 = vmatmul.mubr.f32.gmra.mrb[0].mxu0 %v40
    %v968 = vpop.f32.mrb[0].mxu0
    %v969 = vadd.f32 %v895, %v968
    %v970 = vpop.f32.mrb[0].mxu0
    %971 = vmatprep.mubr.f32.mxu0 0.0
    %972 = vmatmul.mubr.f32.gmra.mrb[0].mxu0 %v41
    %v973 = vpop.f32.mrb[0].mxu0
    %v974 = vadd.f32 %v895, %v973
    %v975 = vpop.f32.mrb[0].mxu0
    %976 = vmatprep.mubr.f32.mxu0 0.0
    %977 = vmatmul.mubr.f32.gmra.mrb[0].mxu0 %v42
    %v978 = vpop.f32.mrb[0].mxu0
    %v979 = vadd.f32 %v895, %v978
    %v980 = vpop.f32.mrb[0].mxu0
    %981 = vmatprep.mubr.f32.mxu0 0.0
    %982 = vmatmul.mubr.f32.gmra.mrb[0].mxu0 %v43
    %v983 = vpop.f32.mrb[0].mxu0
    %v984 = vadd.f32 %v895, %v983
    %v985 = vpop.f32.mrb[0].mxu0
    %986 = vmatprep.mubr.f32.mxu0 0.0
    %987 = vmatmul.mubr.f32.gmra.mrb[0].mxu0 %v44
    %v988 = vpop.f32.mrb[0].mxu0
    %v989 = vadd.f32 %v895, %v988
    %v990 = vpop.f32.mrb[0].mxu0
    %991 = vmatprep.mubr.f32.mxu0 0.0
    %992 = vmatmul.mubr.f32.gmra.mrb[0].mxu0 %v45
    %v993 = vpop.f32.mrb[0].mxu0
    %v994 = vadd.f32 %v895, %v993
    %v995 = vpop.f32.mrb[0].mxu0
    %996 = vmatprep.mubr.f32.mxu0 0.0
    %997 = vmatmul.mubr.f32.gmra.mrb[0].mxu0 %v46
    %v998 = vpop.f32.mrb[0].mxu0
    %v999 = vadd.f32 %v895, %v998
    %v1000 = vpop.f32.mrb[0].mxu0
    %1001 = vmatprep.mubr.f32.mxu0 0.0
    %1002 = vmatmul.mubr.f32.gmra.mrb[0].mxu0 %v47
    %v1003 = vpop.f32.mrb[0].mxu0
    %v1004 = vadd.f32 %v895, %v1003
    %v1005 = vpop.f32.mrb[0].mxu0
    %1006 = vmatprep.mubr.f32.mxu0 0.0
    %1007 = vmatmul.mubr.f32.gmra.mrb[0].mxu0 %v48
    %v1008 = vpop.f32.mrb[0].mxu0
    %v1009 = vadd.f32 %v895, %v1008
    %v1010 = vpop.f32.mrb[0].mxu0
    %1011 = vmatprep.mubr.f32.mxu0 0.0
    %1012 = vmatmul.mubr.f32.gmra.mrb[0].mxu0 %v49
    %v1013 = vpop.f32.mrb[0].mxu0
    %v1014 = vadd.f32 %v895, %v1013
    %v1015 = vpop.f32.mrb[0].mxu0
    %1016 = vmatprep.mubr.f32.mxu0 0.0
    %1017 = vmatmul.mubr.f32.gmra.mrb[0].mxu0 %v50
    %v1018 = vpop.f32.mrb[0].mxu0
    %v1019 = vadd.f32 %v895, %v1018
    %v1020 = vpop.f32.mrb[0].mxu0
    %1021 = vmatprep.mubr.f32.mxu0 0.0
    %1022 = vmatmul.mubr.f32.gmra.mrb[0].mxu0 %v51
    %v1023 = vpop.f32.mrb[0].mxu0
    %v1024 = vadd.f32 %v895, %v1023
    %v1025 = vpop.f32.mrb[0].mxu0
    %1026 = vmatprep.mubr.f32.mxu0 0.0
    %1027 = vmatmul.mubr.f32.gmra.mrb[0].mxu0 %v52
    %v1028 = vpop.f32.mrb[0].mxu0
    %v1029 = vadd.f32 %v895, %v1028
    %v1030 = vpop.f32.mrb[0].mxu0
    %1031 = vmatprep.mubr.f32.mxu0 0.0
    %1032 = vmatmul.mubr.f32.gmra.mrb[0].mxu0 %v53
    %v1033 = vpop.f32.mrb[0].mxu0
    %v1034 = vadd.f32 %v895, %v1033
    %v1035 = vpop.f32.mrb[0].mxu0
    %1036 = vmatprep.mubr.f32.mxu0 0.0
    %1037 = vmatmul.mubr.f32.gmra.mrb[0].mxu0 %v54
    %v1038 = vpop.f32.mrb[0].mxu0
    %v1039 = vadd.f32 %v895, %v1038
    %v1040 = vpop.f32.mrb[0].mxu0
    %1041 = vdwg.mxu0
    %v1042 = vmax.f32 %v964, 0.0
    %v1043 = vmax.f32 %v969, 0.0
    %v1044 = vmax.f32 %v974, 0.0
    %v1045 = vmax.f32 %v979, 0.0
    %v1046 = vmax.f32 %v984, 0.0
    %v1047 = vmax.f32 %v989, 0.0
    %v1048 = vmax.f32 %v994, 0.0
    %v1049 = vmax.f32 %v999, 0.0
    %v1050 = vmax.f32 %v1004, 0.0
    %v1051 = vmax.f32 %v1009, 0.0
    %v1052 = vmax.f32 %v1014, 0.0
    %v1053 = vmax.f32 %v1019, 0.0
    %v1054 = vmax.f32 %v1024, 0.0
    %v1055 = vmax.f32 %v1029, 0.0
    %v1056 = vmax.f32 %v1034, 0.0
    %v1057 = vmax.f32 %v1039, 0.0
    %v1058 = vld [vmem:[%s2] sm:$0xf]
    %1059 = vmatprep.subr.mxu0 0.0
    %1060 = vmatpush1.msra.mxu0 %v1042
    %1061 = vmatprep.subr.mxu0 0.0
    %1062 = vmatpush1.msra.mxu0 %v1043
    %1063 = vmatprep.subr.mxu0 0.0
    %1064 = vmatpush1.msra.mxu0 %v1044
    %1065 = vmatprep.subr.mxu0 0.0
    %1066 = vmatpush1.msra.mxu0 %v1045
    %1067 = vmatprep.subr.mxu0 0.0
    %1068 = vmatpush1.msra.mxu0 %v1046
    %1069 = vmatprep.subr.mxu0 0.0
    %1070 = vmatpush1.msra.mxu0 %v1047
    %1071 = vmatprep.subr.mxu0 0.0
    %1072 = vmatpush1.msra.mxu0 %v1048
    %1073 = vmatprep.subr.mxu0 0.0
    %1074 = vmatpush1.msra.mxu0 %v1049
    %1075 = vmatprep.subr.mxu0 0.0
    %1076 = vmatpush1.msra.mxu0 %v1050
    %1077 = vmatprep.subr.mxu0 0.0
    %1078 = vmatpush1.msra.mxu0 %v1051
    %1079 = vmatprep.subr.mxu0 0.0
    %1080 = vmatpush1.msra.mxu0 %v1052
    %1081 = vmatprep.subr.mxu0 0.0
    %1082 = vmatpush1.msra.mxu0 %v1053
    %1083 = vmatprep.subr.mxu0 0.0
    %1084 = vmatpush1.msra.mxu0 %v1054
    %1085 = vmatprep.subr.mxu0 0.0
    %1086 = vmatpush1.msra.mxu0 %v1055
    %1087 = vmatprep.subr.mxu0 0.0
    %1088 = vmatpush1.msra.mxu0 %v1056
    %1089 = vmatprep.subr.mxu0 0.0
    %1090 = vmatpush1.msra.mxu0 %v1057
    %1091 = vmatprep.subr.mxu0 0.0
    %1092 = vmatpush1.msra.mxu0 0.0
    %1093 = vmatprep.subr.mxu0 0.0
    %1094 = vmatpush1.msra.mxu0 0.0
    %1095 = vmatprep.subr.mxu0 0.0
    %1096 = vmatpush1.msra.mxu0 0.0
    %1097 = vmatprep.subr.mxu0 0.0
    %1098 = vmatpush1.msra.mxu0 0.0
    %1099 = vmatprep.subr.mxu0 0.0
    %1100 = vmatpush1.msra.mxu0 0.0
    %1101 = vmatprep.subr.mxu0 0.0
    %1102 = vmatpush1.msra.mxu0 0.0
    %1103 = vmatprep.subr.mxu0 0.0
    %1104 = vmatpush1.msra.mxu0 0.0
    %1105 = vmatprep.subr.mxu0 0.0
    %1106 = vmatpush1.msra.mxu0 0.0
    %1107 = vmatprep.subr.mxu0 0.0
    %1108 = vmatpush1.msra.mxu0 0.0
    %1109 = vmatprep.subr.mxu0 0.0
    %1110 = vmatpush1.msra.mxu0 0.0
    %1111 = vmatprep.subr.mxu0 0.0
    %1112 = vmatpush1.msra.mxu0 0.0
    %1113 = vmatprep.subr.mxu0 0.0
    %1114 = vmatpush1.msra.mxu0 0.0
    %1115 = vmatprep.subr.mxu0 0.0
    %1116 = vmatpush1.msra.mxu0 0.0
    %1117 = vmatprep.subr.mxu0 0.0
    %1118 = vmatpush1.msra.mxu0 0.0
    %1119 = vmatprep.subr.mxu0 0.0
    %1120 = vmatpush1.msra.mxu0 0.0
    %1121 = vmatprep.subr.mxu0 0.0
    %1122 = vmatpush1.msra.mxu0 0.0
    %1123 = vmatprep.mubr.f32.mxu0 0.0
    %1124 = vmatmul.mubr.f32.gmra.mrb[0].mxu0 %v1058
    %v1125 = vpop.f32.mrb[0].mxu0
    %v1126 = vadd.f32 0.0, %v1125
    %v1127 = vpop.f32.mrb[0].mxu0
    %1128 = vdwg.mxu0
    %v1129 = vld [vmem:[%s9] sm:$0xff]
    %v1130 = vld [vmem:[%s9 + $0x8] sm:$0xff]
    %v1131 = vld [vmem:[%s9 + $0x10] sm:$0xff]
    %v1132 = vld [vmem:[%s9 + $0x18] sm:$0xff]
    %v1133 = vld [vmem:[%s9 + $0x20] sm:$0xff]
    %v1134 = vld [vmem:[%s9 + $0x28] sm:$0xff]
    %v1135 = vld [vmem:[%s9 + $0x30] sm:$0xff]
    %v1136 = vld [vmem:[%s9 + $0x38] sm:$0xff]
    %v1137 = vld [vmem:[%s9 + $0x40] sm:$0xff]
    %v1138 = vld [vmem:[%s9 + $0x48] sm:$0xff]
    %v1139 = vld [vmem:[%s9 + $0x50] sm:$0xff]
    %v1140 = vld [vmem:[%s9 + $0x58] sm:$0xff]
    %v1141 = vld [vmem:[%s9 + $0x60] sm:$0xff]
    %v1142 = vld [vmem:[%s9 + $0x68] sm:$0xff]
    %v1143 = vld [vmem:[%s9 + $0x70] sm:$0xff]
    %v1144 = vld [vmem:[%s9 + $0x78] sm:$0xff]
    %v1145 = vld [vmem:[%s10] sm:$0x1]
    %v1147 = vlaneseq
    %v1148 = vshrl.u32 %v1147, 7
    %v1149 = vsub.s32 0, %v1148
    %v1150 = vrot.slane %v1145, %v1149
    %1152 = vmatprep.subr.mxu0 0.0
    %1153 = vmatpush1.msra.mxu0 %v1129
    %1154 = vmatprep.subr.mxu0 0.0
    %1155 = vmatpush1.msra.mxu0 %v1130
    %1156 = vmatprep.subr.mxu0 0.0
    %1157 = vmatpush1.msra.mxu0 %v1131
    %1158 = vmatprep.subr.mxu0 0.0
    %1159 = vmatpush1.msra.mxu0 %v1132
    %1160 = vmatprep.subr.mxu0 0.0
    %1161 = vmatpush1.msra.mxu0 %v1133
    %1162 = vmatprep.subr.mxu0 0.0
    %1163 = vmatpush1.msra.mxu0 %v1134
    %1164 = vmatprep.subr.mxu0 0.0
    %1165 = vmatpush1.msra.mxu0 %v1135
    %1166 = vmatprep.subr.mxu0 0.0
    %1167 = vmatpush1.msra.mxu0 %v1136
    %1168 = vmatprep.subr.mxu0 0.0
    %1169 = vmatpush1.msra.mxu0 %v1137
    %1170 = vmatprep.subr.mxu0 0.0
    %1171 = vmatpush1.msra.mxu0 %v1138
    %1172 = vmatprep.subr.mxu0 0.0
    %1173 = vmatpush1.msra.mxu0 %v1139
    %1174 = vmatprep.subr.mxu0 0.0
    %1175 = vmatpush1.msra.mxu0 %v1140
    %1176 = vmatprep.subr.mxu0 0.0
    %1177 = vmatpush1.msra.mxu0 %v1141
    %1178 = vmatprep.subr.mxu0 0.0
    %1179 = vmatpush1.msra.mxu0 %v1142
    %1180 = vmatprep.subr.mxu0 0.0
    %1181 = vmatpush1.msra.mxu0 %v1143
    %1182 = vmatprep.subr.mxu0 0.0
    %1183 = vmatpush1.msra.mxu0 %v1144
    %1184 = vmatprep.subr.mxu0 0.0
    %1185 = vmatpush1.msra.mxu0 0.0
    %1186 = vmatprep.subr.mxu0 0.0
    %1187 = vmatpush1.msra.mxu0 0.0
    %1188 = vmatprep.subr.mxu0 0.0
    %1189 = vmatpush1.msra.mxu0 0.0
    %1190 = vmatprep.subr.mxu0 0.0
    %1191 = vmatpush1.msra.mxu0 0.0
    %1192 = vmatprep.subr.mxu0 0.0
    %1193 = vmatpush1.msra.mxu0 0.0
    %1194 = vmatprep.subr.mxu0 0.0
    %1195 = vmatpush1.msra.mxu0 0.0
    %1196 = vmatprep.subr.mxu0 0.0
    %1197 = vmatpush1.msra.mxu0 0.0
    %1198 = vmatprep.subr.mxu0 0.0
    %1199 = vmatpush1.msra.mxu0 0.0
    %1200 = vmatprep.subr.mxu0 0.0
    %1201 = vmatpush1.msra.mxu0 0.0
    %1202 = vmatprep.subr.mxu0 0.0
    %1203 = vmatpush1.msra.mxu0 0.0
    %1204 = vmatprep.subr.mxu0 0.0
    %1205 = vmatpush1.msra.mxu0 0.0
    %1206 = vmatprep.subr.mxu0 0.0
    %1207 = vmatpush1.msra.mxu0 0.0
    %1208 = vmatprep.subr.mxu0 0.0
    %1209 = vmatpush1.msra.mxu0 0.0
    %1210 = vmatprep.subr.mxu0 0.0
    %1211 = vmatpush1.msra.mxu0 0.0
    %1212 = vmatprep.subr.mxu0 0.0
    %1213 = vmatpush1.msra.mxu0 0.0
    %1214 = vmatprep.subr.mxu0 0.0
    %1215 = vmatpush1.msra.mxu0 0.0
    %1216 = vmatprep.mubr.f32.mxu0 0.0
    %1217 = vmatmul.mubr.f32.gmra.mrb[0].mxu0 %v1126
    %v1218 = vpop.f32.mrb[0].mxu0
    %v1219 = vadd.f32 %v1150, %v1218
    %v1220 = vpop.f32.mrb[0].mxu0
    %1221 = vdwg.mxu0
    %1222 = vst [vmem:[#allocation2] sm:$0xf] %v1219
    // Predicated region
    $region46: #{graph_t_factor_forward.1} parent=1 // pred_check
      _
    $region47: #{graph_t_factor_forward.1} parent=1 // pred_check_branch
      %1224 = sbr.rel (0) target = $region49
    $region48: #{graph_t_factor_forward.1} parent=1 // pred_region
      %s1226 = ssub.s32 64, 64
      %1227 = vsyncadd [#allocation3], %s1226
      %s1229 = sshll.u32 [#allocation2], 4
      %s1230 = int_to_ptr.vmem [resolvable:$true] %s1229
      %1232 = dma.vmem_to_hbm [thread:$0]  %s1230, 64, %s11, [#allocation3]
    $region49: #{graph_t_factor_forward.1} parent=1 // pred_fallthru
      _
    // Predicated region
    $region50: #{graph_t_factor_forward.1} parent=1 // pred_check
      _
    $region51: #{graph_t_factor_forward.1} parent=1 // pred_check_branch
      %1234 = sbr.rel (0) target = $region53
    $region52: #{graph_t_factor_forward.1} parent=1 // pred_region
      %1235 = dma.done [#allocation3], 64
    $region53: #{graph_t_factor_forward.1} parent=1 // pred_fallthru
      _
    %1236 = vsyncpa [#allocation3], 1

</llo_original>
